<compile_context>
chip_gen: v7x
topology: tpu7x:2x2x1
jax: 0.10.0
libtpu: 0.0.40
codegen_flags: <defaults>
</compile_context>

<pallas_src>
import functools

import numpy as np

import jax
import jax.numpy as jnp
from jax.experimental import pallas as pl
from jax.experimental.pallas import tpu as pltpu


_LANE = 128


def _cdiv(a: int, b: int) -> int:
    return -(-a // b)


def _round_up(a: int, b: int) -> int:
    return _cdiv(a, b) * b


def _upsample1d_kernel(x_ref, rep_ref, o_ref, *, valid_len, block_len, ragged):
    # x_ref: (Rb, Lb), rep_ref: (Lb, Lb*s) one-hot 0/1, o_ref: (Rb, Lb*s)
    x = x_ref[...]
    if ragged:
        # Last length tile is ragged: zero the stale columns of the VMEM
        # buffer so 0 * NaN garbage cannot contaminate valid output columns
        # through the matmul K dimension.  Statically compiled out otherwise.
        start = pl.program_id(1) * block_len
        col = jax.lax.broadcasted_iota(jnp.int32, x.shape, 1)
        x = jnp.where(col < (valid_len - start), x, 0)
    # Single MXU matmul; exact for float dtypes (each output column has exactly
    # one nonzero 0/1 contribution; f32 path verified exact to 1e-6 on HW).
    o_ref[...] = jnp.dot(
        x, rep_ref[...], preferred_element_type=jnp.float32
    ).astype(o_ref.dtype)


def upsample1d(x: jax.Array, scale_factor: int) -> jax.Array:
    """Nearest-neighbor upsample along the last axis of an (N, C, L) array."""
    # TODO(synk): only integer scale factors are supported (non-integer
    # UpsamplingNearest2d scale factors change the output-size / index rule).
    assert int(scale_factor) == scale_factor and scale_factor >= 1
    s = int(scale_factor)

    N, C, L = x.shape
    rows, length = N * C, L

    # ---- fold length chunks into rows when rows is tiny but L is long -------
    # upsampling is chunk-local, so (rows, L) -> (rows*g, L/g) is exact and the
    # reshapes are free (contiguous).  Keeps per-step DMA / MXU rows large.
    fold = 1
    if rows < 64 and length >= 2 * _LANE:
        max_fold = min(max(512 // rows, 1), length // _LANE)
        for cand in range(max_fold, 1, -1):
            if length % cand == 0:
                fold = cand
                break
    rows *= fold
    length //= fold
    x2 = x.reshape(rows, length)

    itemsize = jnp.dtype(x.dtype).itemsize
    sub_pack = max(8, 32 // itemsize)  # sublane packing: 8 f32, 16 bf16, 32 i8

    # ---- tile selection ------------------------------------------------------
    # Length tile: full length when the output width stays small, else 128
    # input columns (lane-aligned; output block = 128*s lanes, dense stores,
    # rep matrix and VMEM bounded even for large s).
    if length * s <= 2048 or length <= _LANE:
        Lb = length
    else:
        Lb = _LANE
    n_len = _cdiv(length, Lb)

    # Row tile: balanced tiles of at most ~512 rows; force >= 2 grid steps when
    # possible (v7x megacore); round to the dtype's sublane packing.
    n_row = _cdiv(rows, 512)
    if n_row * n_len < 2 and rows > sub_pack:
        n_row = 2
    Rb = _round_up(_cdiv(rows, n_row), sub_pack)
    # Cap Rb so a double-buffered output block stays well inside scoped VMEM
    # even for large scale factors.
    max_out_block_bytes = 4 * 1024 * 1024
    rb_cap = max(sub_pack, (max_out_block_bytes // (Lb * s * itemsize)) // sub_pack * sub_pack)
    Rb = min(Rb, rb_cap)
    if Rb > rows:
        Rb = rows  # full-dim block: no alignment requirement, no padding
    n_row = _cdiv(rows, Rb)

    # ---- replication matrix (host constant) ----------------------------------
    # rep[l, i] = 1 iff i // s == l; built once with numpy -> compile-time const.
    rep_np = (np.arange(Lb * s)[None, :] // s == np.arange(Lb)[:, None])
    rep = jnp.asarray(rep_np, dtype=x.dtype)
    # TODO(synk): integer input dtypes ride through the f32 MXU accumulator;
    # values above 2**24 would lose precision (float inputs are exact).

    kernel = functools.partial(
        _upsample1d_kernel,
        valid_len=length,
        block_len=Lb,
        ragged=(length % Lb != 0),
    )

    cost = pl.CostEstimate(
        flops=2 * (n_row * Rb) * (n_len * Lb) * Lb * s,
        transcendentals=0,
        bytes_accessed=itemsize * (rows * length * (1 + s) + Lb * Lb * s),
    )

    out2 = pl.pallas_call(
        kernel,
        out_shape=jax.ShapeDtypeStruct((rows, length * s), x.dtype),
        grid=(n_row, n_len),
        in_specs=[
            pl.BlockSpec((Rb, Lb), lambda r, l: (r, l)),
            # Constant block index -> fetched once, stays resident in VMEM.
            # TODO(synk): pipeline_mode=pl.Buffered(1) would drop the unused
            # second rep buffer (<~1 MiB here); omitted since VMEM has ample
            # headroom at these tile sizes.
            pl.BlockSpec((Lb, Lb * s), lambda r, l: (0, 0)),
        ],
        out_specs=pl.BlockSpec((Rb, Lb * s), lambda r, l: (r, l)),
        compiler_params=pltpu.CompilerParams(
            dimension_semantics=("parallel", "parallel"),
            vmem_limit_bytes=32 * 1024 * 1024,
        ),
        cost_estimate=cost,
    )(x2, rep)

    # Free reshape back: folded rows are contiguous length chunks of the output.
    return out2.reshape(N, C, L * s)


if __name__ == "__main__":
    key = jax.random.PRNGKey(0)

    # 1) Small case consistent with the module: N=2, C=4, L=16, scale_factor=4.
    x = jax.random.normal(key, (2, 4, 16), dtype=jnp.float32)
    out = jax.block_until_ready(upsample1d(x, 4))
    expected = jnp.repeat(x, 4, axis=-1)
    assert out.shape == (2, 4, 64), out.shape
    assert jnp.allclose(out, expected, atol=1e-6, rtol=1e-6), "mismatch (small)"

    # 2) Fold + ragged-row path (rows folded 36->72, 2 balanced row tiles).
    x2 = jax.random.normal(jax.random.PRNGKey(1), (3, 12, 300), dtype=jnp.float32)
    out2 = jax.block_until_ready(upsample1d(x2, 3))
    expected2 = jnp.repeat(x2, 3, axis=-1)
    assert out2.shape == (3, 12, 900), out2.shape
    assert jnp.allclose(out2, expected2, atol=1e-6, rtol=1e-6), "mismatch (fold/rows)"

    # 3) Ragged length-tile path (L=200 tiled at Lb=128, in-kernel masking).
    x3 = jax.random.normal(jax.random.PRNGKey(2), (2, 32, 200), dtype=jnp.float32)
    out3 = jax.block_until_ready(upsample1d(x3, 16))
    expected3 = jnp.repeat(x3, 16, axis=-1)
    assert out3.shape == (2, 32, 3200), out3.shape
    assert jnp.allclose(out3, expected3, atol=1e-6, rtol=1e-6), "mismatch (ragged L)"

    # 4) bf16 path (sublane packing = 16).
    x4 = jax.random.normal(jax.random.PRNGKey(3), (2, 4, 16), dtype=jnp.bfloat16)
    out4 = jax.block_until_ready(upsample1d(x4, 2))
    expected4 = jnp.repeat(x4, 2, axis=-1)
    assert out4.shape == (2, 4, 32), out4.shape
    assert jnp.allclose(out4.astype(jnp.float32), expected4.astype(jnp.float32)), "mismatch (bf16)"

    print("KERNEL_OK")
</pallas_src>

<mosaic_0001>
module attributes {stable_mosaic.version = 11 : i64} {
  func.func @_upsample1d_kernel(%arg0: i32, %arg1: i32, %arg2: memref<8x16xf32, #tpu.memory_space<vmem>>, %arg3: memref<16x64xf32, #tpu.memory_space<vmem>>, %arg4: memref<8x64xf32, #tpu.memory_space<vmem>>) attributes {dimension_semantics = [#tpu.dimension_semantics<parallel>, #tpu.dimension_semantics<parallel>], iteration_bounds = array<i64: 1, 1>, scalar_prefetch = 0 : i64, scratch_operands = 0 : i64, tpu.core_type = #tpu.core_type<tc>, window_params = [{transform_indices = @transform_0, window_bounds = array<i64: 8, 16>}, {pipeline_mode = #tpu.pipeline_mode<synchronous>, transform_indices = @transform_1, window_bounds = array<i64: 16, 64>}, {transform_indices = @transform_2, window_bounds = array<i64: 8, 64>}]} {
    %c0 = arith.constant 0 : index
    %c0_0 = arith.constant 0 : index
    %0 = vector.load %arg2[%c0, %c0_0] : memref<8x16xf32, #tpu.memory_space<vmem>>, vector<8x16xf32>
    %c0_1 = arith.constant 0 : index
    %c0_2 = arith.constant 0 : index
    %1 = vector.load %arg3[%c0_1, %c0_2] : memref<16x64xf32, #tpu.memory_space<vmem>>, vector<16x64xf32>
    %cst = arith.constant dense<0.000000e+00> : vector<8x64xf32>
    %2 = tpu.matmul %0, %1, %cst {dimension_numbers = #tpu.dot_dimension_numbers<[1], [0], [0], [1], [0, 0, 1, 1], [], []>} : vector<8x16xf32>, vector<16x64xf32>, vector<8x64xf32> -> vector<8x64xf32>
    %c0_3 = arith.constant 0 : index
    %c0_4 = arith.constant 0 : index
    %3 = vector.load %arg4[%c0_3, %c0_4] : memref<8x64xf32, #tpu.memory_space<vmem>>, vector<8x64xf32>
    tpu.vector_store %arg4[%c0_3, %c0_4], %2 {strides = array<i32>} : memref<8x64xf32, #tpu.memory_space<vmem>>, vector<8x64xf32>,
    return
  }
  func.func @transform_0(%arg0: i32, %arg1: i32) -> (i32, i32) {
    %c0_i32 = arith.constant 0 : i32
    return %arg0, %arg1 : i32, i32
  }
  func.func @transform_1(%arg0: i32, %arg1: i32) -> (i32, i32) {
    %c0_i32 = arith.constant 0 : i32
    %c0_i32_0 = arith.constant 0 : i32
    %c0_i32_1 = arith.constant 0 : i32
    return %c0_i32, %c0_i32_0 : i32, i32
  }
  func.func @transform_2(%arg0: i32, %arg1: i32) -> (i32, i32) {
    %c0_i32 = arith.constant 0 : i32
    return %arg0, %arg1 : i32, i32
  }
}

</mosaic_0001>

<llo_original>
// kernel: tpu_custom_call.1
$region0: #{tpu_custom_call.1}
  #allocation0 [shape = 'u32[]', space=smem, size = 0x4, offset = 0x4, fixed_abs, tag = 'smem constant byte address 0x4 - core index']
  #allocation1 [shape = 'u32[144,128]{1,0:T(1,128)}', space=vmem, size = 0x12000, scoped, tag = 'internal scratch']
  %s0 = inlined_call_operand.hbm [shape: f32[8,16], index: 0, kind: input, shape index: {}]
  %s1 = inlined_call_operand.hbm [shape: f32[16,64], index: 1, kind: input, shape index: {}]
  %s2 = inlined_call_operand.hbm [shape: f32[8,64], index: 2, kind: output, shape index: {}]
  %s3 = sld [smem:[#allocation0]]
  $region26: #{tpu_custom_call.1} parent=0
    _
  %s5 = ssub.s32 1, %s3
  %s6 = scalar_select 0, %s5, %s3
  $region1: #{tpu_custom_call.1} parent=0
    #allocation2 [shape = 'u8[4096]{0}', space=vmem, size = 0x1000, scoped, tag = 'input window, operand 0, single buffered']
    #allocation3 [shape = 's32[1]{0}', space=sflag, size = 0x4, scoped, tag = 'scoped memory for tpu_custom_call.1']
    #allocation4 [shape = 's32[1]{0}', space=sflag, size = 0x4, scoped, tag = 'scoped memory for tpu_custom_call.1']
    #allocation5 [shape = 'u8[8192]{0}', space=vmem, size = 0x2000, scoped, tag = 'input window, operand 1, single buffered']
    #allocation6 [shape = 's32[1]{0}', space=sflag, size = 0x4, scoped, tag = 'scoped memory for tpu_custom_call.1']
    #allocation7 [shape = 'u8[4096]{0}', space=vmem, size = 0x1000, scoped, tag = 'output window, operand 0, single buffered']
    %7 = vsyncpa [#allocation3], 0
    %8 = vsyncpa [#allocation6], 0
    %9 = vsyncpa [#allocation4], 0
    // Predicated region
    $region2: #{tpu_custom_call.1} parent=1 // pred_check
      _
    $region3: #{tpu_custom_call.1} parent=1 // pred_check_branch
      %11 = sbr.rel (0) target = $region5
    $region4: #{tpu_custom_call.1} parent=1 // pred_region
      %s13 = ssub.s32 128, 128
      %14 = vsyncadd [#allocation3], %s13
      %s16 = sshll.u32 [#allocation2], 4
      %s17 = int_to_ptr.vmem [resolvable:$true] %s16
      %19 = dma.hbm_to_vmem [thread:$0]  %s0, 128, %s17, [#allocation3]
    $region5: #{tpu_custom_call.1} parent=1 // pred_fallthru
      _
    // Predicated region
    $region6: #{tpu_custom_call.1} parent=1 // pred_check
      _
    $region7: #{tpu_custom_call.1} parent=1 // pred_check_branch
      %21 = sbr.rel (0) target = $region9
    $region8: #{tpu_custom_call.1} parent=1 // pred_region
      %s23 = ssub.s32 256, 256
      %24 = vsyncadd [#allocation6], %s23
      %s25 = sshll.u32 [#allocation5], 4
      %s26 = int_to_ptr.vmem [resolvable:$true] %s25
      %31 = dma.hbm_to_vmem [thread:$0]  %s1, 256, %s26, [#allocation6], 128, 128, 8
    $region9: #{tpu_custom_call.1} parent=1 // pred_fallthru
      _
    // Predicated region
    $region10: #{tpu_custom_call.1} parent=1 // pred_check
      _
    $region11: #{tpu_custom_call.1} parent=1 // pred_check_branch
      %33 = sbr.rel (0) target = $region13
    $region12: #{tpu_custom_call.1} parent=1 // pred_region
      %34 = dma.done [#allocation3], 128
    $region13: #{tpu_custom_call.1} parent=1 // pred_fallthru
      _
    // Predicated region
    $region14: #{tpu_custom_call.1} parent=1 // pred_check
      _
    $region15: #{tpu_custom_call.1} parent=1 // pred_check_branch
      %36 = sbr.rel (0) target = $region17
    $region16: #{tpu_custom_call.1} parent=1 // pred_region
      %37 = dma.done [#allocation6], 256
    $region17: #{tpu_custom_call.1} parent=1 // pred_fallthru
      _
    %v38 = vld [vmem:[#allocation2] sm:$0xff]
    %v39 = vld [vmem:[#allocation5] sm:$0xff]
    %v40 = vld [vmem:[#allocation5 + $0x8] sm:$0xff]
    %vm41 = vcmask 130048
    %v43 = vsel %vm41, %v38, 0
    %45 = vmatprep.subr.mxu0 0.0
    %46 = vmatpush1.msra.mxu0 %v39
    %47 = vmatprep.subr.mxu0 0.0
    %48 = vmatpush1.msra.mxu0 %v40
    %49 = vmatprep.subr.mxu0 0.0
    %50 = vmatpush1.msra.mxu0 0.0
    %51 = vmatprep.subr.mxu0 0.0
    %52 = vmatpush1.msra.mxu0 0.0
    %53 = vmatprep.subr.mxu0 0.0
    %54 = vmatpush1.msra.mxu0 0.0
    %55 = vmatprep.subr.mxu0 0.0
    %56 = vmatpush1.msra.mxu0 0.0
    %57 = vmatprep.subr.mxu0 0.0
    %58 = vmatpush1.msra.mxu0 0.0
    %59 = vmatprep.subr.mxu0 0.0
    %60 = vmatpush1.msra.mxu0 0.0
    %61 = vmatprep.subr.mxu0 0.0
    %62 = vmatpush1.msra.mxu0 0.0
    %63 = vmatprep.subr.mxu0 0.0
    %64 = vmatpush1.msra.mxu0 0.0
    %65 = vmatprep.subr.mxu0 0.0
    %66 = vmatpush1.msra.mxu0 0.0
    %67 = vmatprep.subr.mxu0 0.0
    %68 = vmatpush1.msra.mxu0 0.0
    %69 = vmatprep.subr.mxu0 0.0
    %70 = vmatpush1.msra.mxu0 0.0
    %71 = vmatprep.subr.mxu0 0.0
    %72 = vmatpush1.msra.mxu0 0.0
    %73 = vmatprep.subr.mxu0 0.0
    %74 = vmatpush1.msra.mxu0 0.0
    %75 = vmatprep.subr.mxu0 0.0
    %76 = vmatpush1.msra.mxu0 0.0
    %77 = vmatprep.subr.mxu0 0.0
    %78 = vmatpush1.msra.mxu0 0.0
    %79 = vmatprep.subr.mxu0 0.0
    %80 = vmatpush1.msra.mxu0 0.0
    %81 = vmatprep.subr.mxu0 0.0
    %82 = vmatpush1.msra.mxu0 0.0
    %83 = vmatprep.subr.mxu0 0.0
    %84 = vmatpush1.msra.mxu0 0.0
    %85 = vmatprep.subr.mxu0 0.0
    %86 = vmatpush1.msra.mxu0 0.0
    %87 = vmatprep.subr.mxu0 0.0
    %88 = vmatpush1.msra.mxu0 0.0
    %89 = vmatprep.subr.mxu0 0.0
    %90 = vmatpush1.msra.mxu0 0.0
    %91 = vmatprep.subr.mxu0 0.0
    %92 = vmatpush1.msra.mxu0 0.0
    %93 = vmatprep.subr.mxu0 0.0
    %94 = vmatpush1.msra.mxu0 0.0
    %95 = vmatprep.subr.mxu0 0.0
    %96 = vmatpush1.msra.mxu0 0.0
    %97 = vmatprep.subr.mxu0 0.0
    %98 = vmatpush1.msra.mxu0 0.0
    %99 = vmatprep.subr.mxu0 0.0
    %100 = vmatpush1.msra.mxu0 0.0
    %101 = vmatprep.subr.mxu0 0.0
    %102 = vmatpush1.msra.mxu0 0.0
    %103 = vmatprep.subr.mxu0 0.0
    %104 = vmatpush1.msra.mxu0 0.0
    %105 = vmatprep.subr.mxu0 0.0
    %106 = vmatpush1.msra.mxu0 0.0
    %107 = vmatprep.subr.mxu0 0.0
    %108 = vmatpush1.msra.mxu0 0.0
    %109 = vmatprep.mubr.f32.mxu0 0.0
    %110 = vmatmul.mubr.f32.gmra.mrb[0].mxu0 %v43
    %v111 = vpop.f32.mrb[0].mxu0
    %v112 = vadd.f32 0.0, %v111
    %v113 = vpop.f32.mrb[0].mxu0
    %114 = vdwg.mxu0
    %vm115 = vcmask 523264
    %116 = vst.msk [vmem:[#allocation7] sm:$0xff] %vm115, %v112
    // Predicated region
    $region18: #{tpu_custom_call.1} parent=1 // pred_check
      _
    $region19: #{tpu_custom_call.1} parent=1 // pred_check_branch
      %118 = sbr.rel (0) target = $region21
    $region20: #{tpu_custom_call.1} parent=1 // pred_region
      %s120 = ssub.s32 128, 128
      %121 = vsyncadd [#allocation4], %s120
      %s123 = sshll.u32 [#allocation7], 4
      %s124 = int_to_ptr.vmem [resolvable:$true] %s123
      %126 = dma.vmem_to_hbm [thread:$0]  %s124, 128, %s2, [#allocation4]
    $region21: #{tpu_custom_call.1} parent=1 // pred_fallthru
      _
    // Predicated region
    $region22: #{tpu_custom_call.1} parent=1 // pred_check
      _
    $region23: #{tpu_custom_call.1} parent=1 // pred_check_branch
      %128 = sbr.rel (0) target = $region25
    $region24: #{tpu_custom_call.1} parent=1 // pred_region
      %129 = dma.done [#allocation4], 128
    $region25: #{tpu_custom_call.1} parent=1 // pred_fallthru
      _
    %130 = vsyncpa [#allocation3], 1
    %131 = vsyncpa [#allocation6], 1
    %132 = vsyncpa [#allocation4], 1

</llo_original>
